<compile_context>
chip_gen: v7x
topology: tpu7x:2x2x1
jax: 0.10.0
libtpu: 0.0.40
codegen_flags: <defaults>
</compile_context>

<pallas_src>
import functools

import jax
import jax.numpy as jnp
from jax.experimental import pallas as pl
from jax.experimental.pallas import tpu as pltpu

_LANES = 128
_SUBLANES = 8
_NUM_CORES = 2  # leading "parallel" grid axis; uses both TCs on v7x, no-op cost on v5e/v6e


def _rmse_partial_kernel(yhat_ref, y_ref, o_ref, acc_ref, *,
                         block_rows, steps, full_rows, rem, full_blocks, fold):
    c = pl.program_id(0)  # parallel (core) index
    i = pl.program_id(1)  # sequential reduction index within this core

    @pl.when(i == 0)
    def _():
        acc_ref[...] = jnp.zeros_like(acc_ref)

    # Global (unclamped) row-block index handled at this step.
    b = c * steps + i

    def _accumulate(sq):
        if fold:
            # Fold (block_rows, 128) -> (8, 128): reduction over the leading
            # axis is just elementwise vreg adds (VPU), no cross-lane work.
            acc_ref[...] += jnp.sum(sq.reshape(-1, _SUBLANES, _LANES), axis=0)
        else:
            acc_ref[...] += sq

    # Fast path: every element of this block is a real input element.
    @pl.when(b < full_blocks)
    def _():
        d = yhat_ref[...].astype(jnp.float32) - y_ref[...].astype(jnp.float32)
        _accumulate(d * d)

    # Slow path: ragged tail block and/or clamped idle-core block -> mask.
    @pl.when(b >= full_blocks)
    def _():
        row0 = b * block_rows
        g_row = row0 + jax.lax.broadcasted_iota(jnp.int32, (block_rows, _LANES), 0)
        lane = jax.lax.broadcasted_iota(jnp.int32, (block_rows, _LANES), 1)
        # Element (g_row, lane) of the slab is a real input element iff it lies
        # before the original element count n = full_rows*128 + rem.
        valid = (g_row < full_rows) | ((g_row == full_rows) & (lane < rem))
        d = yhat_ref[...].astype(jnp.float32) - y_ref[...].astype(jnp.float32)
        _accumulate(jnp.where(valid, d * d, 0.0))

    @pl.when(i == pl.num_programs(1) - 1)
    def _():
        o_ref[...] = jnp.sum(acc_ref[...]).reshape(1, 1, 1)


def rmse_loss(yhat, y, *, block_rows=4096, lanes=_LANES):
    """Pallas TPU implementation of sqrt(mean((yhat - y)**2))."""
    assert yhat.shape == y.shape, "yhat and y must have the same shape"
    n = int(yhat.size)
    assert n > 0

    rows = pl.cdiv(n, lanes)            # rows of the (rows, 128) lane-dense slab
    full_rows, rem = divmod(n, lanes)   # fully-valid rows / valid lanes in tail row

    # Small inputs: a single full-array block (block equal to full dims is legal).
    block_rows_eff = rows if rows <= block_rows else block_rows
    total_blocks = pl.cdiv(rows, block_rows_eff)
    steps = pl.cdiv(total_blocks, _NUM_CORES)
    last_block = total_blocks - 1
    # Blocks strictly below this index contain only valid elements (no masking).
    full_blocks = full_rows // block_rows_eff
    fold = (block_rows_eff % _SUBLANES) == 0

    # Flatten to the lane-dense slab.  Ravel/reshape of a contiguous array is
    # free; only when n % 128 != 0 do we pad the <128-element ragged tail.
    # TODO(synk): for ragged n this pad materializes a copy of the flattened
    # input; a zero-copy path would need manual 1-D DMA + in-VMEM relayout.
    yh = jnp.ravel(yhat)
    yt = jnp.ravel(y)
    if rem != 0:
        pad = rows * lanes - n
        yh = jnp.pad(yh, (0, pad))
        yt = jnp.pad(yt, (0, pad))
    yh = yh.reshape(rows, lanes)
    yt = yt.reshape(rows, lanes)

    def in_map(c, i):
        # Clamp out-of-range steps (odd block counts / idle core) onto the last
        # real block; their contribution is masked to zero inside the kernel.
        return (jnp.minimum(c * steps + i, last_block), 0)

    acc_shape = (_SUBLANES, lanes) if fold else (block_rows_eff, lanes)

    kernel = functools.partial(
        _rmse_partial_kernel,
        block_rows=block_rows_eff,
        steps=steps,
        full_rows=full_rows,
        rem=rem,
        full_blocks=full_blocks,
        fold=fold,
    )

    partials = pl.pallas_call(
        kernel,
        out_shape=jax.ShapeDtypeStruct((_NUM_CORES, 1, 1), jnp.float32),
        grid_spec=pltpu.PrefetchScalarGridSpec(
            num_scalar_prefetch=0,
            grid=(_NUM_CORES, steps),
            in_specs=[
                pl.BlockSpec((block_rows_eff, lanes), in_map),
                pl.BlockSpec((block_rows_eff, lanes), in_map),
            ],
            out_specs=pl.BlockSpec((1, 1, 1), lambda c, i: (c, 0, 0)),
            scratch_shapes=[pltpu.VMEM(acc_shape, jnp.float32)],
        ),
        compiler_params=pltpu.CompilerParams(
            dimension_semantics=("parallel", "arbitrary"),
            vmem_limit_bytes=32 * 1024 * 1024,
        ),
    )(yh, yt)

    # Tiny scalar epilogue: combine per-core partial sums, normalize, sqrt.
    return jnp.sqrt(jnp.sum(partials) / n)


if __name__ == "__main__":
    key = jax.random.PRNGKey(0)
    k1, k2, k3, k4 = jax.random.split(key, 4)

    # Typical NCHW regression output shape.
    yhat = jax.random.normal(k1, (2, 4, 16, 16), dtype=jnp.float32)
    y = jax.random.normal(k2, (2, 4, 16, 16), dtype=jnp.float32)

    loss = rmse_loss(yhat, y)
    loss = jax.block_until_ready(loss)
    ref = jnp.sqrt(jnp.mean((yhat - y) ** 2))
    assert jnp.allclose(loss, ref, rtol=1e-5, atol=1e-6), (loss, ref)

    # Ragged size (n % 128 != 0) to exercise the in-kernel tail masking.
    yhat2 = jax.random.normal(k3, (2, 3, 7, 5), dtype=jnp.float32)
    y2 = jax.random.normal(k4, (2, 3, 7, 5), dtype=jnp.float32)
    loss2 = jax.block_until_ready(rmse_loss(yhat2, y2))
    ref2 = jnp.sqrt(jnp.mean((yhat2 - y2) ** 2))
    assert jnp.allclose(loss2, ref2, rtol=1e-5, atol=1e-6), (loss2, ref2)

    print("KERNEL_OK")
</pallas_src>

<mosaic_0001>
module attributes {stable_mosaic.version = 11 : i64} {
  func.func @_rmse_partial_kernel(%arg0: i32, %arg1: i32, %arg2: memref<16x128xf32, #tpu.memory_space<vmem>>, %arg3: memref<16x128xf32, #tpu.memory_space<vmem>>, %arg4: memref<1x1x1xf32, #tpu.memory_space<vmem>>, %arg5: memref<8x128xf32, #tpu.memory_space<vmem>>) attributes {dimension_semantics = [#tpu.dimension_semantics<parallel>, #tpu.dimension_semantics<arbitrary>], iteration_bounds = array<i64: 2, 1>, scalar_prefetch = 0 : i64, scratch_operands = 1 : i64, tpu.core_type = #tpu.core_type<tc>, window_params = [{transform_indices = @transform_0, window_bounds = array<i64: 16, 128>}, {transform_indices = @transform_1, window_bounds = array<i64: 16, 128>}, {transform_indices = @transform_2, window_bounds = array<i64: 1, 1, 1>}]} {
    %c0_i32 = arith.constant 0 : i32
    %0 = arith.cmpi eq, %arg1, %c0_i32 : i32
    %1 = arith.extui %0 : i1 to i32
    %c0_i32_0 = arith.constant 0 : i32
    %2 = arith.cmpi ne, %1, %c0_i32_0 : i32
    scf.if %2 {
      %cst = arith.constant 0.000000e+00 : f32
      %14 = vector.broadcast %cst : f32 to vector<8x128xf32>
      %c0 = arith.constant 0 : index
      %c0_7 = arith.constant 0 : index
      %15 = vector.load %arg5[%c0, %c0_7] : memref<8x128xf32, #tpu.memory_space<vmem>>, vector<8x128xf32>
      tpu.vector_store %arg5[%c0, %c0_7], %14 {strides = array<i32>} : memref<8x128xf32, #tpu.memory_space<vmem>>, vector<8x128xf32>,
    } else {
    }
    %c1_i32 = arith.constant 1 : i32
    %3 = arith.muli %arg0, %c1_i32 : i32
    %4 = arith.addi %3, %arg1 : i32
    %c1_i32_1 = arith.constant 1 : i32
    %5 = arith.cmpi slt, %4, %c1_i32_1 : i32
    %6 = arith.extui %5 : i1 to i32
    %c0_i32_2 = arith.constant 0 : i32
    %7 = arith.cmpi ne, %6, %c0_i32_2 : i32
    scf.if %7 {
      %c0 = arith.constant 0 : index
      %c0_7 = arith.constant 0 : index
      %14 = vector.load %arg2[%c0, %c0_7] : memref<16x128xf32, #tpu.memory_space<vmem>>, vector<16x128xf32>
      %c0_8 = arith.constant 0 : index
      %c0_9 = arith.constant 0 : index
      %15 = vector.load %arg3[%c0_8, %c0_9] : memref<16x128xf32, #tpu.memory_space<vmem>>, vector<16x128xf32>
      %16 = arith.subf %14, %15 : vector<16x128xf32>
      %17 = arith.mulf %16, %16 : vector<16x128xf32>
      %c0_10 = arith.constant 0 : index
      %c0_11 = arith.constant 0 : index
      %18 = vector.load %arg5[%c0_10, %c0_11] : memref<8x128xf32, #tpu.memory_space<vmem>>, vector<8x128xf32>
      %19 = vector.shape_cast %17 : vector<16x128xf32> to vector<2x8x128xf32>
      %cst = arith.constant dense<0.000000e+00> : vector<8x128xf32>
      %20 = vector.multi_reduction <add>, %19, %cst [0] : vector<2x8x128xf32> to vector<8x128xf32>
      %21 = arith.addf %18, %20 : vector<8x128xf32>
      %c0_12 = arith.constant 0 : index
      %c0_13 = arith.constant 0 : index
      %22 = vector.load %arg5[%c0_12, %c0_13] : memref<8x128xf32, #tpu.memory_space<vmem>>, vector<8x128xf32>
      tpu.vector_store %arg5[%c0_12, %c0_13], %21 {strides = array<i32>} : memref<8x128xf32, #tpu.memory_space<vmem>>, vector<8x128xf32>,
    } else {
    }
    %c1_i32_3 = arith.constant 1 : i32
    %8 = arith.cmpi sge, %4, %c1_i32_3 : i32
    %9 = arith.extui %8 : i1 to i32
    %c0_i32_4 = arith.constant 0 : i32
    %10 = arith.cmpi ne, %9, %c0_i32_4 : i32
    scf.if %10 {
      %c16_i32 = arith.constant 16 : i32
      %14 = arith.muli %4, %c16_i32 : i32
      %15 = tpu.iota {dimensions = array<i32: 0>} : vector<16x128xi32>
      %16 = vector.broadcast %14 : i32 to vector<16x128xi32>
      %17 = arith.addi %16, %15 : vector<16x128xi32>
      %18 = tpu.iota {dimensions = array<i32: 1>} : vector<16x128xi32>
      %c16_i32_7 = arith.constant 16 : i32
      %19 = vector.broadcast %c16_i32_7 : i32 to vector<16x128xi32>
      %20 = arith.cmpi slt, %17, %19 : vector<16x128xi32>
      %c16_i32_8 = arith.constant 16 : i32
      %21 = vector.broadcast %c16_i32_8 : i32 to vector<16x128xi32>
      %22 = arith.cmpi eq, %17, %21 : vector<16x128xi32>
      %c0_i32_9 = arith.constant 0 : i32
      %23 = vector.broadcast %c0_i32_9 : i32 to vector<16x128xi32>
      %24 = arith.cmpi slt, %18, %23 : vector<16x128xi32>
      %25 = arith.andi %22, %24 : vector<16x128xi1>
      %26 = arith.ori %20, %25 : vector<16x128xi1>
      %c0 = arith.constant 0 : index
      %c0_10 = arith.constant 0 : index
      %27 = vector.load %arg2[%c0, %c0_10] : memref<16x128xf32, #tpu.memory_space<vmem>>, vector<16x128xf32>
      %c0_11 = arith.constant 0 : index
      %c0_12 = arith.constant 0 : index
      %28 = vector.load %arg3[%c0_11, %c0_12] : memref<16x128xf32, #tpu.memory_space<vmem>>, vector<16x128xf32>
      %29 = arith.subf %27, %28 : vector<16x128xf32>
      %30 = arith.mulf %29, %29 : vector<16x128xf32>
      %cst = arith.constant 0.000000e+00 : f32
      %31 = vector.broadcast %cst : f32 to vector<16x128xf32>
      %32 = arith.select %26, %30, %31 : vector<16x128xi1>, vector<16x128xf32>
      %c0_13 = arith.constant 0 : index
      %c0_14 = arith.constant 0 : index
      %33 = vector.load %arg5[%c0_13, %c0_14] : memref<8x128xf32, #tpu.memory_space<vmem>>, vector<8x128xf32>
      %34 = vector.shape_cast %32 : vector<16x128xf32> to vector<2x8x128xf32>
      %cst_15 = arith.constant dense<0.000000e+00> : vector<8x128xf32>
      %35 = vector.multi_reduction <add>, %34, %cst_15 [0] : vector<2x8x128xf32> to vector<8x128xf32>
      %36 = arith.addf %33, %35 : vector<8x128xf32>
      %c0_16 = arith.constant 0 : index
      %c0_17 = arith.constant 0 : index
      %37 = vector.load %arg5[%c0_16, %c0_17] : memref<8x128xf32, #tpu.memory_space<vmem>>, vector<8x128xf32>
      tpu.vector_store %arg5[%c0_16, %c0_17], %36 {strides = array<i32>} : memref<8x128xf32, #tpu.memory_space<vmem>>, vector<8x128xf32>,
    } else {
    }
    %c0_i32_5 = arith.constant 0 : i32
    %11 = arith.cmpi eq, %arg1, %c0_i32_5 : i32
    %12 = arith.extui %11 : i1 to i32
    %c0_i32_6 = arith.constant 0 : i32
    %13 = arith.cmpi ne, %12, %c0_i32_6 : i32
    scf.if %13 {
      %c0 = arith.constant 0 : index
      %c0_7 = arith.constant 0 : index
      %14 = vector.load %arg5[%c0, %c0_7] : memref<8x128xf32, #tpu.memory_space<vmem>>, vector<8x128xf32>
      %15 = vector.shape_cast %14 : vector<8x128xf32> to vector<1x8x128xf32>
      %cst = arith.constant dense<0.000000e+00> : vector<1xf32>
      %16 = vector.multi_reduction <add>, %15, %cst [1, 2] : vector<1x8x128xf32> to vector<1xf32>
      %17 = vector.shape_cast %16 : vector<1xf32> to vector<1x1x1xf32>
      %18 = vector.extract %17[0, 0, 0] : f32 from vector<1x1x1xf32>
      %19 = vector.broadcast %18 : f32 to vector<1x1x1xf32>
      %c0_8 = arith.constant 0 : index
      %c0_9 = arith.constant 0 : index
      %c0_10 = arith.constant 0 : index
      %20 = vector.load %arg4[%c0_8, %c0_9, %c0_10] : memref<1x1x1xf32, #tpu.memory_space<vmem>>, vector<1x1x1xf32>
      tpu.vector_store %arg4[%c0_8, %c0_9, %c0_10], %19 {strides = array<i32>} : memref<1x1x1xf32, #tpu.memory_space<vmem>>, vector<1x1x1xf32>,
    } else {
    }
    return
  }
  func.func @transform_0(%arg0: i32, %arg1: i32) -> (i32, i32) {
    %c1_i32 = arith.constant 1 : i32
    %0 = arith.muli %arg0, %c1_i32 : i32
    %1 = arith.addi %0, %arg1 : i32
    %c0_i32 = arith.constant 0 : i32
    %2 = arith.minsi %1, %c0_i32 : i32
    %c0_i32_0 = arith.constant 0 : i32
    %c0_i32_1 = arith.constant 0 : i32
    return %2, %c0_i32_0 : i32, i32
  }
  func.func @transform_1(%arg0: i32, %arg1: i32) -> (i32, i32) {
    %c1_i32 = arith.constant 1 : i32
    %0 = arith.muli %arg0, %c1_i32 : i32
    %1 = arith.addi %0, %arg1 : i32
    %c0_i32 = arith.constant 0 : i32
    %2 = arith.minsi %1, %c0_i32 : i32
    %c0_i32_0 = arith.constant 0 : i32
    %c0_i32_1 = arith.constant 0 : i32
    return %2, %c0_i32_0 : i32, i32
  }
  func.func @transform_2(%arg0: i32, %arg1: i32) -> (i32, i32, i32) {
    %c0_i32 = arith.constant 0 : i32
    %c0_i32_0 = arith.constant 0 : i32
    %c0_i32_1 = arith.constant 0 : i32
    return %arg0, %c0_i32, %c0_i32_0 : i32, i32, i32
  }
}

</mosaic_0001>

<llo_original>
// kernel: tpu_custom_call.1
$region0: #{tpu_custom_call.1}
  #allocation0 [shape = 'u32[]', space=smem, size = 0x4, offset = 0x4, fixed_abs, tag = 'smem constant byte address 0x4 - core index']
  #allocation1 [shape = 'u32[144,128]{1,0:T(1,128)}', space=vmem, size = 0x12000, scoped, tag = 'internal scratch']
  #allocation2 [shape = 'f32[8,128]{1,0:T(8,128)}', space=vmem, size = 0x1000, scoped, tag = 'scratch operand']
  %s0 = inlined_call_operand.hbm [shape: f32[16,128], index: 0, kind: input, shape index: {}]
  %s1 = inlined_call_operand.hbm [shape: f32[16,128], index: 1, kind: input, shape index: {}]
  %s2 = inlined_call_operand.vmem [shape: f32[2,1,1], index: 2, kind: output, shape index: {}]
  %s3 = sld [smem:[#allocation0]]
  $region65: #{tpu_custom_call.1} parent=0
    _
  %s5 = ssub.s32 1, %s3
  %s6 = scalar_select 0, %s5, %s3
  $region1: #{tpu_custom_call.1} parent=0
    #allocation3 [shape = 'u8[16384]{0}', space=vmem, size = 0x4000, scoped, tag = 'input window, operand 0']
    #allocation4 [shape = 's32[2]{0}', space=sflag, size = 0x8, scoped, tag = 'scoped memory for tpu_custom_call.1']
    #allocation5 [shape = 'u8[16384]{0}', space=vmem, size = 0x4000, scoped, tag = 'input window, operand 1']
    #allocation6 [shape = 's32[2]{0}', space=sflag, size = 0x8, scoped, tag = 'scoped memory for tpu_custom_call.1']
    %7 = vsyncpa [#allocation4], 0
    %s8 = scalar_lea.sflag [#allocation4], 1
    %9 = vsyncpa %s8, 0
    %10 = vsyncpa [#allocation6], 0
    %s11 = scalar_lea.sflag [#allocation6], 1
    %12 = vsyncpa %s11, 0
    loop: start=0, step=1, limit=4
    $region2: #{tpu_custom_call.1} parent=1 // loop_pre_header
      _
    $region3: #{tpu_custom_call.1} parent=1 // loop_header
      %s14 = sphi 0, %s18
      %p15 = scmp.ge.s32.totalorder %s14, 4
      %s21 = sphi 0, %s33
      %s22 = sphi 0, %s29
      %s23 = sphi 0, %s21
      %s24 = sphi 0, %s22
      %s25 = sphi 0, %s23
      %s26 = sphi 0, %s24
      %s42 = sphi 0, %s44
      %s45 = sphi 0, %s42
      %s46 = sphi 0, %s45
      %s62 = sphi 0, %s46
      %s74 = sphi 0, %s76
      %s77 = sphi 0, %s74
      %s78 = sphi 0, %s77
      %s94 = sphi 0, %s78
      %s100 = sphi 0, %s102
      %s103 = sphi 0, %s100
      %s104 = sphi 0, %s103
      %s120 = sphi 0, %s104
    $region4: #{tpu_custom_call.1} parent=1 // loop_header_branch
      %17 = sbr.rel (%p15) target = $region8
    $region5: #{tpu_custom_call.1} parent=1 // loop_body
      %s19 = ssub.s32 %s14, 1
      %s20 = ssub.s32 %s14, 2
      %s27 = sadd.s32 1, %s22
      %p28 = scmp.ge.s32.totalorder %s27, 1
      %s29 = scalar_select %p28, 0, %s27
      %s30 = sadd.s32 1, %s21
      %s31 = scalar_select %p28, %s30, %s21
      %p32 = scmp.ge.s32.totalorder %s31, 2
      %s33 = scalar_select %p32, 0, %s31
      %s34 = sadd.s32 %s21, %s22
      %p35 = scmp.lt.s32.totalorder %s34, 0
      %s36 = scalar_select %p35, %s34, 0
      %s37 = sadd.s32 %s33, %s29
      %p38 = scmp.lt.s32.totalorder %s37, 0
      %s39 = scalar_select %p38, %s37, 0
      %s40 = ssub.s32 %s36, %s39
      %p41 = scmp.eq.s32.totalorder %s40, 0
      %s43 = sadd.s32 %s42, 1
      %s44 = scalar_select %p41, %s42, %s43
      %p47 = pneg %p41
      %p48 = scmp.eq.s32.totalorder %s14, 1
      %p49 = por %p47, %p48
      %p50 = scmp.ne.s32.totalorder %s42, %s45
      %p51 = scmp.eq.s32.totalorder %s14, 0
      %p52 = por %p50, %p51
      %p53 = scmp.ne.s32.totalorder %s42, %s45
      %p54 = scmp.eq.s32.totalorder %s19, 1
      %p55 = por %p53, %p54
      %p56 = scmp.ne.s32.totalorder %s45, %s46
      %p57 = scmp.eq.s32.totalorder %s19, 0
      %p58 = por %p56, %p57
      %p59 = scmp.ne.s32.totalorder %s45, %s46
      %p60 = scmp.eq.s32.totalorder %s20, 1
      %p61 = por %p59, %p60
      %p63 = scmp.ne.s32.totalorder %s46, %s62
      %p64 = scmp.eq.s32.totalorder %s20, 0
      %p65 = por %p63, %p64
      %s66 = sadd.s32 %s21, %s22
      %p67 = scmp.lt.s32.totalorder %s66, 0
      %s68 = scalar_select %p67, %s66, 0
      %s69 = sadd.s32 %s33, %s29
      %p70 = scmp.lt.s32.totalorder %s69, 0
      %s71 = scalar_select %p70, %s69, 0
      %s72 = ssub.s32 %s68, %s71
      %p73 = scmp.eq.s32.totalorder %s72, 0
      %s75 = sadd.s32 %s74, 1
      %s76 = scalar_select %p73, %s74, %s75
      %p79 = pneg %p73
      %p80 = scmp.eq.s32.totalorder %s14, 1
      %p81 = por %p79, %p80
      %p82 = scmp.ne.s32.totalorder %s74, %s77
      %p83 = scmp.eq.s32.totalorder %s14, 0
      %p84 = por %p82, %p83
      %p85 = scmp.ne.s32.totalorder %s74, %s77
      %p86 = scmp.eq.s32.totalorder %s19, 1
      %p87 = por %p85, %p86
      %p88 = scmp.ne.s32.totalorder %s77, %s78
      %p89 = scmp.eq.s32.totalorder %s19, 0
      %p90 = por %p88, %p89
      %p91 = scmp.ne.s32.totalorder %s77, %s78
      %p92 = scmp.eq.s32.totalorder %s20, 1
      %p93 = por %p91, %p92
      %p95 = scmp.ne.s32.totalorder %s78, %s94
      %p96 = scmp.eq.s32.totalorder %s20, 0
      %p97 = por %p95, %p96
      %s98 = ssub.s32 %s21, %s33
      %p99 = scmp.eq.s32.totalorder %s98, 0
      %s101 = sadd.s32 %s100, 1
      %s102 = scalar_select %p99, %s100, %s101
      %p105 = pneg %p99
      %p106 = scmp.eq.s32.totalorder %s14, 1
      %p107 = por %p105, %p106
      %p108 = scmp.ne.s32.totalorder %s100, %s103
      %p109 = scmp.eq.s32.totalorder %s14, 0
      %p110 = por %p108, %p109
      %p111 = scmp.ne.s32.totalorder %s100, %s103
      %p112 = scmp.eq.s32.totalorder %s19, 1
      %p113 = por %p111, %p112
      %p114 = scmp.ne.s32.totalorder %s103, %s104
      %p115 = scmp.eq.s32.totalorder %s19, 0
      %p116 = por %p114, %p115
      %p117 = scmp.ne.s32.totalorder %s103, %s104
      %p118 = scmp.eq.s32.totalorder %s20, 1
      %p119 = por %p117, %p118
      %p121 = scmp.ne.s32.totalorder %s104, %s120
      %p122 = scmp.eq.s32.totalorder %s20, 0
      %p123 = por %p121, %p122
      %p124 = scmp.le.s32.totalorder 1, %s14
      %p125 = scmp.lt.s32.totalorder %s14, 3
      %p126 = pnand %p124, %p125
      %p127 = pneg %p126
      // Predicated region
      $region9: #{tpu_custom_call.1} parent=5 // pred_check
        _
      $region10: #{tpu_custom_call.1} parent=5 // pred_check_branch
        %129 = sbr.rel (%p126) target = $region12
      $region11: #{tpu_custom_call.1} parent=5 // pred_region
        %s130 = ssub.s32 %s14, 1
      $region12: #{tpu_custom_call.1} parent=5 // pred_fallthru
        _
      %p131 = scmp.lt.s32.totalorder %s14, 2
      // Predicated region
      $region13: #{tpu_custom_call.1} parent=5 // pred_check
        %p132 = pneg %p131
      $region14: #{tpu_custom_call.1} parent=5 // pred_check_branch
        %134 = sbr.rel (%p132) target = $region16
      $region15: #{tpu_custom_call.1} parent=5 // pred_region
        // Predicated region
        $region17: #{tpu_custom_call.1} parent=15 // pred_check
          %p135 = pneg %p52
        $region18: #{tpu_custom_call.1} parent=15 // pred_check_branch
          %137 = sbr.rel (%p135) target = $region20
        $region19: #{tpu_custom_call.1} parent=15 // pred_region
          %s138 = sand.u32 %s42, 1
          %s139 = scalar_lea.sflag [#allocation4], %s138
          %s140 = sand.u32 %s42, 1
          %s141 = smul.addr %s140, 16
          %s142 = scalar_lea.vmem [#allocation3], %s141
          %s143 = sadd.s32 %s21, %s22
          %p144 = scmp.lt.s32.totalorder %s143, 0
          %s145 = scalar_select %p144, %s143, 0
          %s146 = smul.u32 2, %s145
          %s148 = ssub.s32 256, 256
          %149 = vsyncadd %s139, %s148
          %s150 = smul.addr %s146, 128
          %s151 = scalar_lea.hbm %s0, %s150
          %s152 = sshll.u32 %s142, 4
          %s153 = int_to_ptr.vmem [resolvable:$true] %s152
          %158 = dma.hbm_to_vmem [thread:$0]  %s151, 256, %s153, %s139, 128, 128, 8
        $region20: #{tpu_custom_call.1} parent=15 // pred_fallthru
          _
        // Predicated region
        $region21: #{tpu_custom_call.1} parent=15 // pred_check
          %p159 = pneg %p84
        $region22: #{tpu_custom_call.1} parent=15 // pred_check_branch
          %161 = sbr.rel (%p159) target = $region24
        $region23: #{tpu_custom_call.1} parent=15 // pred_region
          %s162 = sand.u32 %s74, 1
          %s163 = scalar_lea.sflag [#allocation6], %s162
          %s164 = sand.u32 %s74, 1
          %s165 = smul.addr %s164, 16
          %s166 = scalar_lea.vmem [#allocation5], %s165
          %s167 = sadd.s32 %s21, %s22
          %p168 = scmp.lt.s32.totalorder %s167, 0
          %s169 = scalar_select %p168, %s167, 0
          %s170 = smul.u32 2, %s169
          %s172 = ssub.s32 256, 256
          %173 = vsyncadd %s163, %s172
          %s174 = smul.addr %s170, 128
          %s175 = scalar_lea.hbm %s1, %s174
          %s176 = sshll.u32 %s166, 4
          %s177 = int_to_ptr.vmem [resolvable:$true] %s176
          %182 = dma.hbm_to_vmem [thread:$0]  %s175, 256, %s177, %s163, 128, 128, 8
        $region24: #{tpu_custom_call.1} parent=15 // pred_fallthru
          _
      $region16: #{tpu_custom_call.1} parent=5 // pred_fallthru
        _
      %p183 = scmp.le.s32.totalorder 1, %s14
      %p184 = scmp.lt.s32.totalorder %s14, 3
      %p185 = pnand %p183, %p184
      %p186 = pneg %p185
      // Predicated region
      $region25: #{tpu_custom_call.1} parent=5 // pred_check
        _
      $region26: #{tpu_custom_call.1} parent=5 // pred_check_branch
        %188 = sbr.rel (%p185) target = $region28
      $region27: #{tpu_custom_call.1} parent=5 // pred_region
        %s189 = ssub.s32 %s14, 1
        %s190 = sand.u32 %s45, 1
        %s191 = scalar_lea.sflag [#allocation4], %s190
        %s192 = sand.u32 %s45, 1
        %s193 = smul.addr %s192, 16
        %s194 = scalar_lea.vmem [#allocation3], %s193
        // Predicated region
        $region29: #{tpu_custom_call.1} parent=27 // pred_check
          %p195 = pneg %p58
        $region30: #{tpu_custom_call.1} parent=27 // pred_check_branch
          %197 = sbr.rel (%p195) target = $region32
        $region31: #{tpu_custom_call.1} parent=27 // pred_region
          %198 = dma.done %s191, 256
        $region32: #{tpu_custom_call.1} parent=27 // pred_fallthru
          _
        %s199 = sand.u32 %s77, 1
        %s200 = scalar_lea.sflag [#allocation6], %s199
        %s201 = sand.u32 %s77, 1
        %s202 = smul.addr %s201, 16
        %s203 = scalar_lea.vmem [#allocation5], %s202
        // Predicated region
        $region33: #{tpu_custom_call.1} parent=27 // pred_check
          %p204 = pneg %p90
        $region34: #{tpu_custom_call.1} parent=27 // pred_check_branch
          %206 = sbr.rel (%p204) target = $region36
        $region35: #{tpu_custom_call.1} parent=27 // pred_region
          %207 = dma.done %s200, 256
        $region36: #{tpu_custom_call.1} parent=27 // pred_fallthru
          _
        %s208 = sand.u32 %s45, 1
        %s209 = scalar_lea.sflag [#allocation4], %s208
        %s210 = sand.u32 %s45, 1
        %s211 = smul.addr %s210, 16
        %s212 = scalar_lea.vmem [#allocation3], %s211
        %p213 = pneg %p58
        %p214 = pneg %p55
        %s215 = sand.u32 %s77, 1
        %s216 = scalar_lea.sflag [#allocation6], %s215
        %s217 = sand.u32 %s77, 1
        %s218 = smul.addr %s217, 16
        %s219 = scalar_lea.vmem [#allocation5], %s218
        %p220 = pneg %p90
        %p221 = pneg %p87
        %p222 = pneg %p116
        %p223 = pneg %p113
        %p224 = scmp.lt.s32.totalorder %s23, 1
        %s225 = scalar_select %p224, %s23, 1
        %s226 = scalar_lea.vmem %s2, %s225
        %s227 = sadd.s32 %s23, %s24
        %p228 = scmp.lt.s32.totalorder %s227, 0
        %s229 = scalar_select %p228, %s227, 0
        %s230 = smul.u32 2, %s229
        %s231 = sadd.s32 %s23, %s24
        %p232 = scmp.lt.s32.totalorder %s231, 0
        %s233 = scalar_select %p232, %s231, 0
        %s234 = smul.u32 2, %s233
        %p235 = scmp.lt.s32.totalorder %s23, 1
        %s236 = scalar_select %p235, %s23, 1
        %s237 = scalar_lea.vmem %s2, %s236
        %p238 = scmp.eq.s32.totalorder %s24, 0
        // Predicated region
        $region37: #{tpu_custom_call.1} parent=27 // pred_check
          %p239 = pneg %p238
        $region38: #{tpu_custom_call.1} parent=27 // pred_check_branch
          %241 = sbr.rel (%p239) target = $region40
        $region39: #{tpu_custom_call.1} parent=27 // pred_region
          %242 = vst [vmem:[#allocation2] sm:$0xff] 0.0
        $region40: #{tpu_custom_call.1} parent=27 // pred_fallthru
          _
        %s243 = sadd.s32 %s23, %s24
        %p244 = scmp.lt.s32.totalorder %s243, 1
        // Predicated region
        $region41: #{tpu_custom_call.1} parent=27 // pred_check
          %p245 = pneg %p244
        $region42: #{tpu_custom_call.1} parent=27 // pred_check_branch
          %247 = sbr.rel (%p245) target = $region44
        $region43: #{tpu_custom_call.1} parent=27 // pred_region
          %v248 = vld [vmem:[%s194] sm:$0xff]
          %v249 = vld [vmem:[%s194 + $0x8] sm:$0xff]
          %v250 = vld [vmem:[%s203] sm:$0xff]
          %v251 = vld [vmem:[%s203 + $0x8] sm:$0xff]
          %v252 = vsub.f32 %v248, %v250
          %v253 = vsub.f32 %v249, %v251
          %v254 = vmul.f32 %v252, %v252
          %v255 = vmul.f32 %v253, %v253
          %v256 = vld [vmem:[#allocation2] sm:$0xff]
          %v257 = vadd.f32 %v254, %v255
          %v258 = vadd.f32 %v256, %v257
          %259 = vst [vmem:[#allocation2] sm:$0xff] %v258
        $region44: #{tpu_custom_call.1} parent=27 // pred_fallthru
          _
        %p260 = scmp.ge.s32.totalorder %s243, 1
        // Predicated region
        $region45: #{tpu_custom_call.1} parent=27 // pred_check
          %p261 = pneg %p260
        $region46: #{tpu_custom_call.1} parent=27 // pred_check_branch
          %263 = sbr.rel (%p261) target = $region48
        $region47: #{tpu_custom_call.1} parent=27 // pred_region
          %s264 = smul.u32 %s243, 16
          %v265 = vlaneseq
          %v266 = vshrl.u32 %v265, 7
          %v267 = vadd.s32 %v266, 8
          %v268 = vstv %s264
          %v269 = vadd.s32 %v268, %v266
          %v270 = vadd.s32 %v268, %v267
          %v271 = vlaneseq
          %v272 = vand.u32 %v271, 127
          %vm273 = vcmp.lt.s32.totalorder %v269, 16
          %vm274 = vcmp.lt.s32.totalorder %v270, 16
          %vm275 = vcmp.eq.s32.totalorder %v269, 16
          %vm276 = vcmp.eq.s32.totalorder %v270, 16
          %vm277 = vcmp.lt.s32.totalorder %v272, 0
          %vm278 = vmand %vm275, %vm277
          %vm279 = vmand %vm276, %vm277
          %vm280 = vmor %vm273, %vm278
          %vm281 = vmor %vm274, %vm279
          %v282 = vld [vmem:[%s194] sm:$0xff]
          %v283 = vld [vmem:[%s194 + $0x8] sm:$0xff]
          %v284 = vld [vmem:[%s203] sm:$0xff]
          %v285 = vld [vmem:[%s203 + $0x8] sm:$0xff]
          %v286 = vsub.f32 %v282, %v284
          %v287 = vsub.f32 %v283, %v285
          %v288 = vmul.f32 %v286, %v286
          %v289 = vmul.f32 %v287, %v287
          %v290 = vsel %vm280, %v288, 0.0
          %v291 = vsel %vm281, %v289, 0.0
          %v292 = vld [vmem:[#allocation2] sm:$0xff]
          %v293 = vadd.f32 %v290, %v291
          %v294 = vadd.f32 %v292, %v293
          %295 = vst [vmem:[#allocation2] sm:$0xff] %v294
        $region48: #{tpu_custom_call.1} parent=27 // pred_fallthru
          _
        // Predicated region
        $region49: #{tpu_custom_call.1} parent=27 // pred_check
          %p296 = pneg %p238
        $region50: #{tpu_custom_call.1} parent=27 // pred_check_branch
          %298 = sbr.rel (%p296) target = $region52
        $region51: #{tpu_custom_call.1} parent=27 // pred_region
          %v299 = vld [vmem:[#allocation2] sm:$0xff]
          %300 = vadd.xlane.f32.xlu0 %v299
          %v301 = vpop.xlane.xlu0 %300
          %v302 = vrot.slane %v301, 4
          %v303 = vadd.f32 %v301, %v302
          %v304 = vrot.slane %v303, 2
          %v305 = vadd.f32 %v303, %v304
          %v306 = vrot.slane %v305, 1
          %v307 = vadd.f32 %v305, %v306
          %s308 = vtos %v307
          %v309 = vstv %s308
          %vm310 = vcmask 0
          %311 = vst.msk [vmem:[%s237] sm:$0x1] %vm310, %v309
        $region52: #{tpu_custom_call.1} parent=27 // pred_fallthru
          _
        %p312 = scmp.lt.s32.totalorder %s23, 1
        %s313 = scalar_select %p312, %s23, 1
        %s314 = scalar_lea.vmem %s2, %s313
        // Predicated region
        $region53: #{tpu_custom_call.1} parent=27 // pred_check
          %p315 = pneg %p113
        $region54: #{tpu_custom_call.1} parent=27 // pred_check_branch
          %317 = sbr.rel (%p315) target = $region56
        $region55: #{tpu_custom_call.1} parent=27 // pred_region
          _
        $region56: #{tpu_custom_call.1} parent=27 // pred_fallthru
          _
      $region28: #{tpu_custom_call.1} parent=5 // pred_fallthru
        _
      %p318 = scmp.le.s32.totalorder 2, %s14
      // Predicated region
      $region57: #{tpu_custom_call.1} parent=5 // pred_check
        %p319 = pneg %p318
      $region58: #{tpu_custom_call.1} parent=5 // pred_check_branch
        %321 = sbr.rel (%p319) target = $region60
      $region59: #{tpu_custom_call.1} parent=5 // pred_region
        %s322 = ssub.s32 %s14, 2
        // Predicated region
        $region61: #{tpu_custom_call.1} parent=59 // pred_check
          %p323 = pneg %p119
        $region62: #{tpu_custom_call.1} parent=59 // pred_check_branch
          %325 = sbr.rel (%p323) target = $region64
        $region63: #{tpu_custom_call.1} parent=59 // pred_region
          %p326 = scmp.lt.s32.totalorder %s25, 1
          %s327 = scalar_select %p326, %s25, 1
          %s328 = scalar_lea.vmem %s2, %s327
        $region64: #{tpu_custom_call.1} parent=59 // pred_fallthru
          _
      $region60: #{tpu_custom_call.1} parent=5 // pred_fallthru
        _
    $region6: #{tpu_custom_call.1} parent=1 // loop_footer
      %s18 = sadd.s32 1, %s14
    $region7: #{tpu_custom_call.1} parent=1 // loop_footer_branch
      %13 = sbr.rel target = $region3
    $region8: #{tpu_custom_call.1} parent=1 // loop_exit
      _
    %329 = vsyncpa [#allocation4], 1
    %s330 = scalar_lea.sflag [#allocation4], 1
    %331 = vsyncpa %s330, 1
    %332 = vsyncpa [#allocation6], 1
    %s333 = scalar_lea.sflag [#allocation6], 1
    %334 = vsyncpa %s333, 1

</llo_original>
